<compile_context>
chip_gen: v7x
topology: tpu7x:2x2x1
jax: 0.10.0
libtpu: 0.0.40
codegen_flags: <defaults>
</compile_context>

<pallas_src>
from functools import partial

import jax
import jax.numpy as jnp
from jax.experimental import pallas as pl
from jax.experimental.pallas import tpu as pltpu


def _round_up(x, m):
    return ((x + m - 1) // m) * m


def policy_net_kernel(x_ref, w1_ref, b1_ref, w2t_ref, b2_ref, o_ref, *, chunk):
    """One batch tile: x_ref (4, tb) -> o_ref (2, tb), batch on lanes."""
    H, in_dim = w1_ref.shape            # (16, 4)
    out_dim = w2t_ref.shape[1]          # 2
    tb = x_ref.shape[1]                 # batch-tile width (multiple of 128)
    C = min(chunk, tb)                  # inner lane-chunk width (multiple of 128)

    w1 = w1_ref[...]                    # (H, 4)   fc1.weight
    b1 = b1_ref[...]                    # (H, 1)   fc1.bias  (column)
    w2t = w2t_ref[...]                  # (H, 2)   fc2.weight^T
    b2 = b2_ref[...]                    # (2, 1)   fc2.bias  (column)

    # Hoisted lane-broadcasts of weight/bias columns: materialized once per grid
    # step and reused by every chunk (JAX does not CSE broadcast_in_dim).
    w1b = [jnp.broadcast_to(w1[:, k:k + 1], (H, C)) for k in range(in_dim)]
    w2b = [jnp.broadcast_to(w2t[:, j:j + 1], (H, C)) for j in range(out_dim)]
    b1b = jnp.broadcast_to(b1, (H, C))

    # Static inner chunk loop keeps the live (H, C) activations small.
    for off in range(0, tb, C):
        w = min(C, tb - off)                       # static; multiple of 128
        xc = x_ref[:, off:off + w]                 # (4, w) chunk of the tile

        # Layer 1: h = relu(W1 @ x + b1) -- 4 unrolled VPU FMAs (no MXU for K=4).
        h = b1b[:, :w]
        for k in range(in_dim):
            xk = jnp.broadcast_to(xc[k:k + 1, :], (H, w))   # sublane broadcast
            h = h + w1b[k][:, :w] * xk
        h = jnp.maximum(h, 0.0)                    # (H, w)

        # Layer 2: per output row, elementwise multiply + sublane (XLU) reduction
        # instead of 16 serial FMAs into a sublane-padded (2, w) accumulator.
        rows = [jnp.sum(h * w2b[j][:, :w], axis=0, keepdims=True)
                for j in range(out_dim)]           # out_dim x (1, w)
        y = jnp.concatenate(rows, axis=0) + b2     # (2, w)

        o_ref[:, off:off + w] = y.astype(o_ref.dtype)   # lane-dense store


@partial(jax.jit, static_argnames=("block_b", "chunk", "batch_major_out"))
def policy_net_forward(x, w1, b1, w2, b2, *, block_b=4096, chunk=512,
                       batch_major_out=True):
    """Forward pass matching PyTorch PolicyNet.forward.

    x : (B, 4) f32            (PyTorch convention, features last)
    w1: (H, 4),  b1: (H,)     (fc1.weight / fc1.bias)
    w2: (2, H),  b2: (2,)     (fc2.weight / fc2.bias)
    Returns (B, 2) logits (or (2, B) if batch_major_out=False, which lets a
    downstream softmax/argmax consume the lane-dense layout directly).
    """
    B, in_dim = x.shape
    H = w1.shape[0]
    out_dim = w2.shape[0]

    block_b = _round_up(max(block_b, 128), 128)     # keep tiles lane-aligned
    chunk = _round_up(max(chunk, 128), 128)

    b_lanes = _round_up(B, 128)
    if b_lanes <= 128:
        tb = 128                                    # act()-style: single step
    else:
        # >= 2 grid steps so ("parallel",) can shard across both v7x TCs;
        # clamp to block_b so very large batches stream in ~4K-column tiles.
        tb = min(block_b, _round_up(pl.cdiv(b_lanes, 2), 128))
    grid = (pl.cdiv(B, tb),)                        # no pad: boundary block masked

    # Layout plumbing (single tiny copies, fused under this jit):
    xt = x.T                                        # (4, B)  batch -> lanes
    w2t = w2.T                                      # (H, 2)
    b1c = b1.reshape(H, 1)
    b2c = b2.reshape(out_dim, 1)

    yt = pl.pallas_call(
        partial(policy_net_kernel, chunk=chunk),
        out_shape=jax.ShapeDtypeStruct((out_dim, B), jnp.float32),
        grid_spec=pltpu.PrefetchScalarGridSpec(
            num_scalar_prefetch=0,
            grid=grid,
            in_specs=[
                pl.BlockSpec((in_dim, tb), lambda i: (0, i)),   # x tiles stream
                pl.BlockSpec((H, in_dim), lambda i: (0, 0)),    # weights resident
                pl.BlockSpec((H, 1), lambda i: (0, 0)),
                pl.BlockSpec((H, out_dim), lambda i: (0, 0)),
                pl.BlockSpec((out_dim, 1), lambda i: (0, 0)),
            ],
            out_specs=pl.BlockSpec((out_dim, tb), lambda i: (0, i)),
        ),
        compiler_params=pltpu.CompilerParams(
            dimension_semantics=("parallel",)),
    )(xt, w1, b1c, w2t, b2c)

    return yt.T if batch_major_out else yt          # (B, 2) PyTorch convention


def act(state, w1, b1, w2, b2, *, greedy=False, key=None):
    """PolicyNet.act: host-side policy logic on top of the kernel forward."""
    logits = policy_net_forward(
        jnp.asarray(state, jnp.float32).reshape(1, 4), w1, b1, w2, b2)
    if greedy:
        return int(jnp.argmax(logits, axis=1)[0])
    return int(jax.random.categorical(key, logits, axis=1)[0])


def init_params(key, in_dim=4, hidden=16, out_dim=2):
    """PyTorch-style uniform(-1/sqrt(fan_in), 1/sqrt(fan_in)) init, PyTorch layout."""
    k1, k2, k3, k4 = jax.random.split(key, 4)
    bound1 = 1.0 / jnp.sqrt(in_dim)
    bound2 = 1.0 / jnp.sqrt(hidden)
    w1 = jax.random.uniform(k1, (hidden, in_dim), jnp.float32, -bound1, bound1)
    b1 = jax.random.uniform(k2, (hidden,), jnp.float32, -bound1, bound1)
    w2 = jax.random.uniform(k3, (out_dim, hidden), jnp.float32, -bound2, bound2)
    b2 = jax.random.uniform(k4, (out_dim,), jnp.float32, -bound2, bound2)
    return w1, b1, w2, b2


def _ref_forward(x, w1, b1, w2, b2):
    # Pure-JAX reference, same math as the PyTorch forward.
    return jnp.maximum(x @ w1.T + b1, 0.0) @ w2.T + b2


if __name__ == "__main__":
    key = jax.random.PRNGKey(0)
    pkey, xkey, xkey2, xkey3 = jax.random.split(key, 4)

    w1, b1, w2, b2 = init_params(pkey, in_dim=4, hidden=16, out_dim=2)

    # Small act()-style batch: single grid step, boundary-masked padded columns.
    x_small = jax.random.normal(xkey, (8, 4), jnp.float32)
    out_s = jax.block_until_ready(policy_net_forward(x_small, w1, b1, w2, b2))
    assert out_s.shape == (8, 2)
    assert jnp.allclose(out_s, _ref_forward(x_small, w1, b1, w2, b2),
                        atol=1e-5, rtol=1e-5)

    # Medium rollout batch: 2 parallel grid steps (both-TC path) + boundary block.
    x_med = jax.random.normal(xkey2, (1000, 4), jnp.float32)
    out_m = jax.block_until_ready(policy_net_forward(x_med, w1, b1, w2, b2))
    assert out_m.shape == (1000, 2)
    assert jnp.allclose(out_m, _ref_forward(x_med, w1, b1, w2, b2),
                        atol=1e-5, rtol=1e-5)

    # Larger batch: multi-chunk tiles (512-lane chunks plus a 256-lane tail).
    x_big = jax.random.normal(xkey3, (4500, 4), jnp.float32)
    out_b = jax.block_until_ready(policy_net_forward(x_big, w1, b1, w2, b2))
    assert out_b.shape == (4500, 2)
    assert jnp.allclose(out_b, _ref_forward(x_big, w1, b1, w2, b2),
                        atol=1e-5, rtol=1e-5)

    # PolicyNet.act: softmax sampling / argmax over 2 logits is host-side policy
    # logic kept outside the kernel (plain JAX wrapper above).
    a = act(jnp.array([0.01, -0.02, 0.03, 0.04], jnp.float32),
            w1, b1, w2, b2, greedy=True)
    assert a in (0, 1)

    print("KERNEL_OK")
</pallas_src>

<mosaic_0001>
module attributes {stable_mosaic.version = 11 : i64} {
  func.func @policy_net_kernel(%arg0: i32, %arg1: memref<4x128xf32, #tpu.memory_space<vmem>>, %arg2: memref<16x4xf32, #tpu.memory_space<vmem>>, %arg3: memref<16x1xf32, #tpu.memory_space<vmem>>, %arg4: memref<16x2xf32, #tpu.memory_space<vmem>>, %arg5: memref<2x1xf32, #tpu.memory_space<vmem>>, %arg6: memref<2x128xf32, #tpu.memory_space<vmem>>) attributes {dimension_semantics = [#tpu.dimension_semantics<parallel>], iteration_bounds = array<i64: 1>, scalar_prefetch = 0 : i64, scratch_operands = 0 : i64, tpu.core_type = #tpu.core_type<tc>, window_params = [{transform_indices = @transform_0, window_bounds = array<i64: 4, 128>}, {pipeline_mode = #tpu.pipeline_mode<synchronous>, transform_indices = @transform_1, window_bounds = array<i64: 16, 4>}, {pipeline_mode = #tpu.pipeline_mode<synchronous>, transform_indices = @transform_2, window_bounds = array<i64: 16, 1>}, {pipeline_mode = #tpu.pipeline_mode<synchronous>, transform_indices = @transform_3, window_bounds = array<i64: 16, 2>}, {pipeline_mode = #tpu.pipeline_mode<synchronous>, transform_indices = @transform_4, window_bounds = array<i64: 2, 1>}, {transform_indices = @transform_5, window_bounds = array<i64: 2, 128>}]} {
    %c0 = arith.constant 0 : index
    %c0_0 = arith.constant 0 : index
    %0 = vector.load %arg2[%c0, %c0_0] : memref<16x4xf32, #tpu.memory_space<vmem>>, vector<16x4xf32>
    %c0_1 = arith.constant 0 : index
    %c0_2 = arith.constant 0 : index
    %1 = vector.load %arg3[%c0_1, %c0_2] : memref<16x1xf32, #tpu.memory_space<vmem>>, vector<16x1xf32>
    %c0_3 = arith.constant 0 : index
    %c0_4 = arith.constant 0 : index
    %2 = vector.load %arg4[%c0_3, %c0_4] : memref<16x2xf32, #tpu.memory_space<vmem>>, vector<16x2xf32>
    %c0_5 = arith.constant 0 : index
    %c0_6 = arith.constant 0 : index
    %3 = vector.load %arg5[%c0_5, %c0_6] : memref<2x1xf32, #tpu.memory_space<vmem>>, vector<2x1xf32>
    %4 = vector.extract_strided_slice %0 {offsets = [0, 0], sizes = [16, 1], strides = [1, 1]} : vector<16x4xf32> to vector<16x1xf32>
    %5 = vector.shape_cast %4 : vector<16x1xf32> to vector<16x1xf32>
    %6 = vector.broadcast %5 : vector<16x1xf32> to vector<16x128xf32>
    %7 = vector.extract_strided_slice %0 {offsets = [0, 1], sizes = [16, 1], strides = [1, 1]} : vector<16x4xf32> to vector<16x1xf32>
    %8 = vector.shape_cast %7 : vector<16x1xf32> to vector<16x1xf32>
    %9 = vector.broadcast %8 : vector<16x1xf32> to vector<16x128xf32>
    %10 = vector.extract_strided_slice %0 {offsets = [0, 2], sizes = [16, 1], strides = [1, 1]} : vector<16x4xf32> to vector<16x1xf32>
    %11 = vector.shape_cast %10 : vector<16x1xf32> to vector<16x1xf32>
    %12 = vector.broadcast %11 : vector<16x1xf32> to vector<16x128xf32>
    %13 = vector.extract_strided_slice %0 {offsets = [0, 3], sizes = [16, 1], strides = [1, 1]} : vector<16x4xf32> to vector<16x1xf32>
    %14 = vector.shape_cast %13 : vector<16x1xf32> to vector<16x1xf32>
    %15 = vector.broadcast %14 : vector<16x1xf32> to vector<16x128xf32>
    %16 = vector.extract_strided_slice %2 {offsets = [0, 0], sizes = [16, 1], strides = [1, 1]} : vector<16x2xf32> to vector<16x1xf32>
    %17 = vector.shape_cast %16 : vector<16x1xf32> to vector<16x1xf32>
    %18 = vector.broadcast %17 : vector<16x1xf32> to vector<16x128xf32>
    %19 = vector.extract_strided_slice %2 {offsets = [0, 1], sizes = [16, 1], strides = [1, 1]} : vector<16x2xf32> to vector<16x1xf32>
    %20 = vector.shape_cast %19 : vector<16x1xf32> to vector<16x1xf32>
    %21 = vector.broadcast %20 : vector<16x1xf32> to vector<16x128xf32>
    %22 = vector.shape_cast %1 : vector<16x1xf32> to vector<16x1xf32>
    %23 = vector.broadcast %22 : vector<16x1xf32> to vector<16x128xf32>
    %c0_7 = arith.constant 0 : index
    %c0_8 = arith.constant 0 : index
    %24 = vector.load %arg1[%c0_7, %c0_8] : memref<4x128xf32, #tpu.memory_space<vmem>>, vector<4x128xf32>
    %25 = vector.extract_strided_slice %24 {offsets = [0, 0], sizes = [1, 128], strides = [1, 1]} : vector<4x128xf32> to vector<1x128xf32>
    %26 = vector.shape_cast %25 : vector<1x128xf32> to vector<1x128xf32>
    %27 = vector.broadcast %26 : vector<1x128xf32> to vector<16x128xf32>
    %28 = arith.mulf %6, %27 : vector<16x128xf32>
    %29 = arith.addf %23, %28 : vector<16x128xf32>
    %30 = vector.extract_strided_slice %24 {offsets = [1, 0], sizes = [1, 128], strides = [1, 1]} : vector<4x128xf32> to vector<1x128xf32>
    %31 = vector.shape_cast %30 : vector<1x128xf32> to vector<1x128xf32>
    %32 = vector.broadcast %31 : vector<1x128xf32> to vector<16x128xf32>
    %33 = arith.mulf %9, %32 : vector<16x128xf32>
    %34 = arith.addf %29, %33 : vector<16x128xf32>
    %35 = vector.extract_strided_slice %24 {offsets = [2, 0], sizes = [1, 128], strides = [1, 1]} : vector<4x128xf32> to vector<1x128xf32>
    %36 = vector.shape_cast %35 : vector<1x128xf32> to vector<1x128xf32>
    %37 = vector.broadcast %36 : vector<1x128xf32> to vector<16x128xf32>
    %38 = arith.mulf %12, %37 : vector<16x128xf32>
    %39 = arith.addf %34, %38 : vector<16x128xf32>
    %40 = vector.extract_strided_slice %24 {offsets = [3, 0], sizes = [1, 128], strides = [1, 1]} : vector<4x128xf32> to vector<1x128xf32>
    %41 = vector.shape_cast %40 : vector<1x128xf32> to vector<1x128xf32>
    %42 = vector.broadcast %41 : vector<1x128xf32> to vector<16x128xf32>
    %43 = arith.mulf %15, %42 : vector<16x128xf32>
    %44 = arith.addf %39, %43 : vector<16x128xf32>
    %cst = arith.constant 0.000000e+00 : f32
    %45 = vector.broadcast %cst : f32 to vector<16x128xf32>
    %46 = arith.maximumf %44, %45 : vector<16x128xf32>
    %47 = arith.mulf %46, %18 : vector<16x128xf32>
    %cst_9 = arith.constant dense<0.000000e+00> : vector<128xf32>
    %48 = vector.multi_reduction <add>, %47, %cst_9 [0] : vector<16x128xf32> to vector<128xf32>
    %49 = vector.shape_cast %48 : vector<128xf32> to vector<1x128xf32>
    %50 = arith.mulf %46, %21 : vector<16x128xf32>
    %cst_10 = arith.constant dense<0.000000e+00> : vector<128xf32>
    %51 = vector.multi_reduction <add>, %50, %cst_10 [0] : vector<16x128xf32> to vector<128xf32>
    %52 = vector.shape_cast %51 : vector<128xf32> to vector<1x128xf32>
    %53 = tpu.concatenate %49, %52 in 0 : vector<1x128xf32>, vector<1x128xf32> -> vector<2x128xf32>
    %54 = vector.broadcast %3 : vector<2x1xf32> to vector<2x128xf32>
    %55 = arith.addf %53, %54 : vector<2x128xf32>
    %c0_11 = arith.constant 0 : index
    %c0_12 = arith.constant 0 : index
    %56 = vector.load %arg6[%c0_11, %c0_12] : memref<2x128xf32, #tpu.memory_space<vmem>>, vector<2x128xf32>
    tpu.vector_store %arg6[%c0_11, %c0_12], %55 {strides = array<i32>} : memref<2x128xf32, #tpu.memory_space<vmem>>, vector<2x128xf32>,
    return
  }
  func.func @transform_0(%arg0: i32) -> (i32, i32) {
    %c0_i32 = arith.constant 0 : i32
    %c0_i32_0 = arith.constant 0 : i32
    return %c0_i32, %arg0 : i32, i32
  }
  func.func @transform_1(%arg0: i32) -> (i32, i32) {
    %c0_i32 = arith.constant 0 : i32
    %c0_i32_0 = arith.constant 0 : i32
    %c0_i32_1 = arith.constant 0 : i32
    return %c0_i32, %c0_i32_0 : i32, i32
  }
  func.func @transform_2(%arg0: i32) -> (i32, i32) {
    %c0_i32 = arith.constant 0 : i32
    %c0_i32_0 = arith.constant 0 : i32
    %c0_i32_1 = arith.constant 0 : i32
    return %c0_i32, %c0_i32_0 : i32, i32
  }
  func.func @transform_3(%arg0: i32) -> (i32, i32) {
    %c0_i32 = arith.constant 0 : i32
    %c0_i32_0 = arith.constant 0 : i32
    %c0_i32_1 = arith.constant 0 : i32
    return %c0_i32, %c0_i32_0 : i32, i32
  }
  func.func @transform_4(%arg0: i32) -> (i32, i32) {
    %c0_i32 = arith.constant 0 : i32
    %c0_i32_0 = arith.constant 0 : i32
    %c0_i32_1 = arith.constant 0 : i32
    return %c0_i32, %c0_i32_0 : i32, i32
  }
  func.func @transform_5(%arg0: i32) -> (i32, i32) {
    %c0_i32 = arith.constant 0 : i32
    %c0_i32_0 = arith.constant 0 : i32
    return %c0_i32, %arg0 : i32, i32
  }
}

</mosaic_0001>

<llo_original>
// kernel: policy_net_forward.1
$region0: #{policy_net_forward.1}
  #allocation0 [shape = 'u32[]', space=smem, size = 0x4, offset = 0x4, fixed_abs, tag = 'smem constant byte address 0x4 - core index']
  #allocation1 [shape = 'u32[144,128]{1,0:T(1,128)}', space=vmem, size = 0x12000, scoped, tag = 'internal scratch']
  %s0 = inlined_call_operand.vmem [shape: f32[4,8], index: 0, kind: input, shape index: {}]
  %s1 = inlined_call_operand.vmem [shape: f32[16,4], index: 1, kind: input, shape index: {}]
  %s2 = inlined_call_operand.vmem [shape: f32[16,1], index: 2, kind: input, shape index: {}]
  %s3 = inlined_call_operand.vmem [shape: f32[16,2], index: 3, kind: input, shape index: {}]
  %s4 = inlined_call_operand.vmem [shape: f32[2,1], index: 4, kind: input, shape index: {}]
  %s5 = inlined_call_operand.hbm [shape: f32[2,8], index: 5, kind: output, shape index: {}]
  %s6 = sld [smem:[#allocation0]]
  $region30: #{policy_net_forward.1} parent=0
    _
  %s8 = ssub.s32 1, %s6
  %s9 = scalar_select 0, %s8, %s6
  $region1: #{policy_net_forward.1} parent=0
    #allocation2 [shape = 'u8[1024]{0}', space=vmem, size = 0x400, scoped, tag = 'output window, operand 0, single buffered']
    #allocation3 [shape = 's32[1]{0}', space=sflag, size = 0x4, scoped, tag = 'scoped memory for policy_net_forward.1']
    %10 = vsyncpa [#allocation3], 0
    // Predicated region
    $region2: #{policy_net_forward.1} parent=1 // pred_check
      _
    $region3: #{policy_net_forward.1} parent=1 // pred_check_branch
      %12 = sbr.rel (0) target = $region5
    $region4: #{policy_net_forward.1} parent=1 // pred_region
      _
    $region5: #{policy_net_forward.1} parent=1 // pred_fallthru
      _
    // Predicated region
    $region6: #{policy_net_forward.1} parent=1 // pred_check
      _
    $region7: #{policy_net_forward.1} parent=1 // pred_check_branch
      %14 = sbr.rel (0) target = $region9
    $region8: #{policy_net_forward.1} parent=1 // pred_region
      _
    $region9: #{policy_net_forward.1} parent=1 // pred_fallthru
      _
    // Predicated region
    $region10: #{policy_net_forward.1} parent=1 // pred_check
      _
    $region11: #{policy_net_forward.1} parent=1 // pred_check_branch
      %16 = sbr.rel (0) target = $region13
    $region12: #{policy_net_forward.1} parent=1 // pred_region
      _
    $region13: #{policy_net_forward.1} parent=1 // pred_fallthru
      _
    // Predicated region
    $region14: #{policy_net_forward.1} parent=1 // pred_check
      _
    $region15: #{policy_net_forward.1} parent=1 // pred_check_branch
      %18 = sbr.rel (0) target = $region17
    $region16: #{policy_net_forward.1} parent=1 // pred_region
      _
    $region17: #{policy_net_forward.1} parent=1 // pred_fallthru
      _
    // Predicated region
    $region18: #{policy_net_forward.1} parent=1 // pred_check
      _
    $region19: #{policy_net_forward.1} parent=1 // pred_check_branch
      %20 = sbr.rel (0) target = $region21
    $region20: #{policy_net_forward.1} parent=1 // pred_region
      _
    $region21: #{policy_net_forward.1} parent=1 // pred_fallthru
      _
    %v21 = vld [vmem:[%s1] sm:$0xff]
    %v22 = vld [vmem:[%s1 + $0x8] sm:$0xff]
    %v23 = vld [vmem:[%s2] sm:$0xff]
    %v24 = vld [vmem:[%s2 + $0x8] sm:$0xff]
    %v25 = vld [vmem:[%s3] sm:$0xff]
    %v26 = vld [vmem:[%s3 + $0x8] sm:$0xff]
    %v27 = vld [vmem:[%s4] sm:$0x3]
    %29 = vset.pattern.permute.xlu0 0
    %30 = vperm.xlu0 %29, %v21
    %v31 = vpop.permute.xlu0 %30
    %34 = vset.pattern.permute.xlu0 0
    %35 = vperm.xlu0 %34, %v22
    %v36 = vpop.permute.xlu0 %35
    %38 = vset.pattern.permute.xlu0 1
    %39 = vperm.xlu0 %38, %v21
    %v40 = vpop.permute.xlu0 %39
    %42 = vset.pattern.permute.xlu0 1
    %43 = vperm.xlu0 %42, %v22
    %v44 = vpop.permute.xlu0 %43
    %46 = vset.pattern.permute.xlu0 2
    %47 = vperm.xlu0 %46, %v21
    %v48 = vpop.permute.xlu0 %47
    %50 = vset.pattern.permute.xlu0 2
    %51 = vperm.xlu0 %50, %v22
    %v52 = vpop.permute.xlu0 %51
    %54 = vset.pattern.permute.xlu0 3
    %55 = vperm.xlu0 %54, %v21
    %v56 = vpop.permute.xlu0 %55
    %58 = vset.pattern.permute.xlu0 3
    %59 = vperm.xlu0 %58, %v22
    %v60 = vpop.permute.xlu0 %59
    %63 = vset.pattern.permute.xlu0 0
    %64 = vperm.xlu0 %63, %v25
    %v65 = vpop.permute.xlu0 %64
    %68 = vset.pattern.permute.xlu0 0
    %69 = vperm.xlu0 %68, %v26
    %v70 = vpop.permute.xlu0 %69
    %72 = vset.pattern.permute.xlu0 1
    %73 = vperm.xlu0 %72, %v25
    %v74 = vpop.permute.xlu0 %73
    %76 = vset.pattern.permute.xlu0 1
    %77 = vperm.xlu0 %76, %v26
    %v78 = vpop.permute.xlu0 %77
    %81 = vset.pattern.permute.xlu0 0
    %82 = vperm.xlu0 %81, %v23
    %v83 = vpop.permute.xlu0 %82
    %86 = vset.pattern.permute.xlu0 0
    %87 = vperm.xlu0 %86, %v24
    %v88 = vpop.permute.xlu0 %87
    %v90 = vld [vmem:[%s0] sm:$0xf]
    %v91 = vlaneseq
    %v92 = vshrl.u32 %v91, 7
    %v93 = vsub.s32 0, %v92
    %v94 = vrot.slane %v90, %v93
    %v95 = vmul.f32 %v31, %v94
    %v96 = vmul.f32 %v36, %v94
    %v97 = vadd.f32 %v83, %v95
    %v98 = vadd.f32 %v88, %v96
    %v99 = vlaneseq
    %v100 = vshrl.u32 %v99, 7
    %v101 = vsub.s32 1, %v100
    %v102 = vrot.slane %v90, %v101
    %v103 = vmul.f32 %v40, %v102
    %v104 = vmul.f32 %v44, %v102
    %v105 = vadd.f32 %v97, %v103
    %v106 = vadd.f32 %v98, %v104
    %v107 = vlaneseq
    %v108 = vshrl.u32 %v107, 7
    %v109 = vsub.s32 2, %v108
    %v110 = vrot.slane %v90, %v109
    %v111 = vmul.f32 %v48, %v110
    %v112 = vmul.f32 %v52, %v110
    %v113 = vadd.f32 %v105, %v111
    %v114 = vadd.f32 %v106, %v112
    %v115 = vlaneseq
    %v116 = vshrl.u32 %v115, 7
    %v117 = vsub.s32 3, %v116
    %v118 = vrot.slane %v90, %v117
    %v119 = vmul.f32 %v56, %v118
    %v120 = vmul.f32 %v60, %v118
    %v121 = vadd.f32 %v113, %v119
    %v122 = vadd.f32 %v114, %v120
    %v123 = vmax.f32 %v121, 0.0
    %v124 = vmax.f32 %v122, 0.0
    %v125 = vmul.f32 %v123, %v65
    %v126 = vmul.f32 %v124, %v70
    %v127 = vadd.f32 %v125, %v126
    %v128 = vrot.slane %v127, 4
    %v129 = vadd.f32 %v127, %v128
    %v130 = vrot.slane %v129, 2
    %v131 = vadd.f32 %v129, %v130
    %v132 = vrot.slane %v131, 1
    %v133 = vadd.f32 %v131, %v132
    %v134 = vmul.f32 %v123, %v74
    %v135 = vmul.f32 %v124, %v78
    %v136 = vadd.f32 %v134, %v135
    %v137 = vrot.slane %v136, 4
    %v138 = vadd.f32 %v136, %v137
    %v139 = vrot.slane %v138, 2
    %v140 = vadd.f32 %v138, %v139
    %v141 = vrot.slane %v140, 1
    %v142 = vadd.f32 %v140, %v141
    %vm143 = vcmask 1040384
    %v144 = vsel %vm143, %v133, %v142
    %146 = vset.pattern.permute.xlu0 0
    %147 = vperm.xlu0 %146, %v27
    %v148 = vpop.permute.xlu0 %147
    %v150 = vadd.f32 %v144, %v148
    %151 = vst [vmem:[#allocation2] sm:$0x3] %v150
    // Predicated region
    $region22: #{policy_net_forward.1} parent=1 // pred_check
      _
    $region23: #{policy_net_forward.1} parent=1 // pred_check_branch
      %153 = sbr.rel (0) target = $region25
    $region24: #{policy_net_forward.1} parent=1 // pred_region
      %s155 = ssub.s32 32, 32
      %156 = vsyncadd [#allocation3], %s155
      %s158 = sshll.u32 [#allocation2], 4
      %s159 = int_to_ptr.vmem [resolvable:$true] %s158
      %161 = dma.vmem_to_hbm [thread:$0]  %s159, 32, %s5, [#allocation3]
    $region25: #{policy_net_forward.1} parent=1 // pred_fallthru
      _
    // Predicated region
    $region26: #{policy_net_forward.1} parent=1 // pred_check
      _
    $region27: #{policy_net_forward.1} parent=1 // pred_check_branch
      %163 = sbr.rel (0) target = $region29
    $region28: #{policy_net_forward.1} parent=1 // pred_region
      %164 = dma.done [#allocation3], 32
    $region29: #{policy_net_forward.1} parent=1 // pred_fallthru
      _
    %165 = vsyncpa [#allocation3], 1

</llo_original>
